<compile_context>
chip_gen: v6e
topology: v6e:2x2x1
jax: 0.10.0
libtpu: 0.0.40
codegen_flags: <defaults>
</compile_context>

<pallas_src>
import functools

import jax
import jax.numpy as jnp
from jax.experimental import pallas as pl
from jax.experimental.pallas import tpu as pltpu


def _ce_kernel(logits_ref, targets_ref, out_ref, loss_acc, cnt_acc, *, n_rows):
    i = pl.program_id(0)

    @pl.when(i == 0)
    def _():
        loss_acc[...] = jnp.zeros_like(loss_acc)
        cnt_acc[...] = jnp.zeros_like(cnt_acc)

    # Load in native dtype (bf16 or f32 in HBM), upcast once for the math path.
    logits = logits_ref[...].astype(jnp.float32)        # (TN, C) f32
    tgt = targets_ref[...]                              # (TN, 1) i32
    tn, c = logits.shape

    # Mask remainder rows of the last tile (global row id >= N) and ignored /
    # out-of-range targets (F.cross_entropy default ignore_index=-100).
    row_ids = jax.lax.broadcasted_iota(jnp.int32, (tn, 1), 0) + i * tn
    row_valid = row_ids < n_rows
    tgt_valid = jnp.logical_and(tgt >= 0, tgt < c)
    valid = jnp.logical_and(row_valid, tgt_valid)       # (TN, 1) bool

    # One-hot select of the target logit via iota compare (no gather on TPU).
    col_ids = jax.lax.broadcasted_iota(jnp.int32, (tn, c), 1)
    tgt_mask = col_ids == tgt                           # (TN, C)
    target_logit = jnp.sum(jnp.where(tgt_mask, logits, 0.0), axis=-1, keepdims=True)

    # Numerically-stable logsumexp per row (max/sum -> XLU, exp -> EUP).
    row_max = jnp.max(logits, axis=-1, keepdims=True)
    lse = row_max + jnp.log(jnp.sum(jnp.exp(logits - row_max), axis=-1, keepdims=True))

    per_row = jnp.where(valid, lse - target_logit, 0.0)  # (TN, 1)
    loss_acc[...] += jnp.sum(per_row).reshape(1, 1)
    cnt_acc[...] += jnp.sum(valid.astype(jnp.float32)).reshape(1, 1)

    @pl.when(i == pl.num_programs(0) - 1)
    def _():
        denom = jnp.maximum(cnt_acc[...], 1.0)
        out_ref[...] = loss_acc[...] / denom


def _choose_tile_n(n, c, itemsize):
    """Pick an N-tile sized against the padded (8,128) VMEM layout."""
    c_padded = pl.cdiv(c, 128) * 128
    # logits row (lane-padded) + targets row (1 int32 lane-padded to 128 lanes)
    bytes_per_row = c_padded * itemsize + 128 * 4
    budget = 8 * 1024 * 1024          # per-buffer budget; x2 inputs x2 pipeline bufs
    tn = max(8, budget // bytes_per_row)
    if tn >= n:
        return n                       # single tile: block dim == full array dim is legal
    return max(8, (tn // 8) * 8)       # keep (8,128) sublane divisibility


def set_criterion_forward(outputs, targets, losses=("labels",), weight_dict=None,
                          tile_n=None):
    """JAX/Pallas equivalent of SetCriterion.forward.

    outputs: dict with 'pred_logits' of shape [N, C] (float32 or bfloat16)
    targets: int array of shape [N] (class indices; -100 is ignored)
    Returns a dict of losses (here only 'loss_ce').
    """
    del weight_dict  # unused in forward, same as the PyTorch module
    result = {}
    for loss in losses:
        assert loss == "labels", f"unsupported loss: {loss}"

        logits = jnp.asarray(outputs["pred_logits"])
        if logits.dtype not in (jnp.float32, jnp.bfloat16):
            logits = logits.astype(jnp.float32)        # keep bf16/f32 native in HBM
        tgt = jnp.asarray(targets, jnp.int32).reshape(-1, 1)
        n, c = logits.shape
        itemsize = jnp.dtype(logits.dtype).itemsize

        tn = _choose_tile_n(n, c, itemsize) if tile_n is None else int(tile_n)
        grid_n = pl.cdiv(n, tn)

        cost = pl.CostEstimate(
            flops=5 * n * c,
            transcendentals=n * c,
            bytes_accessed=n * c * itemsize + n * 4 + 4,
        )

        loss_ce = pl.pallas_call(
            functools.partial(_ce_kernel, n_rows=n),
            out_shape=jax.ShapeDtypeStruct((1, 1), jnp.float32),
            grid=(grid_n,),
            in_specs=[
                pl.BlockSpec((tn, c), lambda i: (i, 0)),
                pl.BlockSpec((tn, 1), lambda i: (i, 0)),
            ],
            out_specs=pl.BlockSpec((1, 1), lambda i: (0, 0)),
            scratch_shapes=[
                pltpu.VMEM((1, 1), jnp.float32),   # running loss sum
                pltpu.VMEM((1, 1), jnp.float32),   # running valid-target count
            ],
            compiler_params=pltpu.CompilerParams(
                dimension_semantics=("arbitrary",),   # sequential reduction axis
                vmem_limit_bytes=32 * 1024 * 1024,    # explicit: safe on v5e/v6e/v7x
            ),
            cost_estimate=cost,
        )(logits, tgt)[0, 0]

        result["loss_ce"] = loss_ce
    return result


def _ref_ce(logits_f32, targets):
    """Pure-JAX reference: F.cross_entropy with ignore_index=-100, mean reduction."""
    n, c = logits_f32.shape
    logp = jax.nn.log_softmax(logits_f32, axis=-1)
    valid = jnp.logical_and(targets >= 0, targets < c)
    safe_t = jnp.where(valid, targets, 0)
    picked = -logp[jnp.arange(n), safe_t]
    picked = jnp.where(valid, picked, 0.0)
    return jnp.sum(picked) / jnp.maximum(jnp.sum(valid.astype(jnp.float32)), 1.0)


if __name__ == "__main__":
    key = jax.random.PRNGKey(0)
    k_logits, k_targets = jax.random.split(key)

    # --- primary check: small f32 batch (single tile) ------------------------
    N, C = 8, 32
    pred_logits = jax.random.normal(k_logits, (N, C), dtype=jnp.float32)
    targets = jax.random.randint(k_targets, (N,), 0, C, dtype=jnp.int32)

    out = set_criterion_forward({"pred_logits": pred_logits}, targets,
                                losses=("labels",), weight_dict={"loss_ce": 1.0})
    loss_ce = jax.block_until_ready(out["loss_ce"])
    ref = _ref_ce(pred_logits, targets)
    assert jnp.allclose(loss_ce, ref, atol=1e-5, rtol=1e-5), (loss_ce, ref)

    # --- multi-tile + remainder-mask path with bf16 logits --------------------
    k3, k4 = jax.random.split(k_logits)
    N2, C2 = 40, 160
    logits2_bf16 = jax.random.normal(k3, (N2, C2), dtype=jnp.float32).astype(jnp.bfloat16)
    targets2 = jax.random.randint(k4, (N2,), 0, C2, dtype=jnp.int32)

    out2 = set_criterion_forward({"pred_logits": logits2_bf16}, targets2,
                                 losses=("labels",), tile_n=16)  # grid=3, last tile masked
    loss2 = jax.block_until_ready(out2["loss_ce"])
    ref2 = _ref_ce(logits2_bf16.astype(jnp.float32), targets2)
    assert jnp.allclose(loss2, ref2, atol=1e-4, rtol=1e-4), (loss2, ref2)

    # --- ignore_index=-100 semantics ------------------------------------------
    targets3 = targets.at[0].set(-100).at[3].set(-100)
    out3 = set_criterion_forward({"pred_logits": pred_logits}, targets3,
                                 losses=("labels",))
    loss3 = jax.block_until_ready(out3["loss_ce"])
    ref3 = _ref_ce(pred_logits, targets3)
    assert jnp.allclose(loss3, ref3, atol=1e-5, rtol=1e-5), (loss3, ref3)

    print("KERNEL_OK")
</pallas_src>

<mosaic_0001>
module attributes {stable_mosaic.version = 11 : i64} {
  func.func @_ce_kernel(%arg0: i32, %arg1: memref<8x32xf32, #tpu.memory_space<vmem>>, %arg2: memref<8x1xi32, #tpu.memory_space<vmem>>, %arg3: memref<1x1xf32, #tpu.memory_space<vmem>>, %arg4: memref<1x1xf32, #tpu.memory_space<vmem>>, %arg5: memref<1x1xf32, #tpu.memory_space<vmem>>) attributes {dimension_semantics = [#tpu.dimension_semantics<arbitrary>], iteration_bounds = array<i64: 1>, scalar_prefetch = 0 : i64, scratch_operands = 2 : i64, tpu.core_type = #tpu.core_type<tc>, window_params = [{transform_indices = @transform_0, window_bounds = array<i64: 8, 32>}, {transform_indices = @transform_1, window_bounds = array<i64: 8, 1>}, {pipeline_mode = #tpu.pipeline_mode<synchronous>, transform_indices = @transform_2, window_bounds = array<i64: 1, 1>}]} {
    %c0_i32 = arith.constant 0 : i32
    %0 = arith.cmpi eq, %arg0, %c0_i32 : i32
    %1 = arith.extui %0 : i1 to i32
    %c0_i32_0 = arith.constant 0 : i32
    %2 = arith.cmpi ne, %1, %c0_i32_0 : i32
    scf.if %2 {
      %cst_22 = arith.constant 0.000000e+00 : f32
      %57 = vector.broadcast %cst_22 : f32 to vector<1x1xf32>
      %c0_23 = arith.constant 0 : index
      %c0_24 = arith.constant 0 : index
      %58 = vector.load %arg4[%c0_23, %c0_24] : memref<1x1xf32, #tpu.memory_space<vmem>>, vector<1x1xf32>
      tpu.vector_store %arg4[%c0_23, %c0_24], %57 {strides = array<i32>} : memref<1x1xf32, #tpu.memory_space<vmem>>, vector<1x1xf32>,
      %cst_25 = arith.constant 0.000000e+00 : f32
      %59 = vector.broadcast %cst_25 : f32 to vector<1x1xf32>
      %c0_26 = arith.constant 0 : index
      %c0_27 = arith.constant 0 : index
      %60 = vector.load %arg5[%c0_26, %c0_27] : memref<1x1xf32, #tpu.memory_space<vmem>>, vector<1x1xf32>
      tpu.vector_store %arg5[%c0_26, %c0_27], %59 {strides = array<i32>} : memref<1x1xf32, #tpu.memory_space<vmem>>, vector<1x1xf32>,
    } else {
    }
    %c0 = arith.constant 0 : index
    %c0_1 = arith.constant 0 : index
    %3 = vector.load %arg1[%c0, %c0_1] : memref<8x32xf32, #tpu.memory_space<vmem>>, vector<8x32xf32>
    %c0_2 = arith.constant 0 : index
    %c0_3 = arith.constant 0 : index
    %4 = vector.load %arg2[%c0_2, %c0_3] : memref<8x1xi32, #tpu.memory_space<vmem>>, vector<8x1xi32>
    %5 = tpu.iota {dimensions = array<i32: 0>} : vector<8x1xi32>
    %c8_i32 = arith.constant 8 : i32
    %6 = arith.muli %arg0, %c8_i32 : i32
    %7 = vector.broadcast %6 : i32 to vector<8x1xi32>
    %8 = arith.addi %5, %7 : vector<8x1xi32>
    %c8_i32_4 = arith.constant 8 : i32
    %9 = vector.broadcast %c8_i32_4 : i32 to vector<8x1xi32>
    %10 = arith.cmpi slt, %8, %9 : vector<8x1xi32>
    %c0_i32_5 = arith.constant 0 : i32
    %11 = vector.broadcast %c0_i32_5 : i32 to vector<8x1xi32>
    %12 = arith.cmpi sge, %4, %11 : vector<8x1xi32>
    %c32_i32 = arith.constant 32 : i32
    %13 = vector.broadcast %c32_i32 : i32 to vector<8x1xi32>
    %14 = arith.cmpi slt, %4, %13 : vector<8x1xi32>
    %15 = arith.andi %12, %14 : vector<8x1xi1>
    %16 = arith.andi %10, %15 : vector<8x1xi1>
    %17 = tpu.iota {dimensions = array<i32: 1>} : vector<8x32xi32>
    %18 = vector.broadcast %4 : vector<8x1xi32> to vector<8x32xi32>
    %19 = arith.cmpi eq, %17, %18 : vector<8x32xi32>
    %cst = arith.constant 0.000000e+00 : f32
    %20 = vector.broadcast %cst : f32 to vector<8x32xf32>
    %21 = arith.select %19, %3, %20 : vector<8x32xi1>, vector<8x32xf32>
    %cst_6 = arith.constant dense<0.000000e+00> : vector<8xf32>
    %22 = vector.multi_reduction <add>, %21, %cst_6 [1] : vector<8x32xf32> to vector<8xf32>
    %23 = vector.shape_cast %22 : vector<8xf32> to vector<8x1xf32>
    %cst_7 = arith.constant dense<0xFF800000> : vector<8xf32>
    %24 = vector.multi_reduction <maximumf>, %3, %cst_7 [1] : vector<8x32xf32> to vector<8xf32>
    %25 = vector.shape_cast %24 : vector<8xf32> to vector<8x1xf32>
    %26 = vector.broadcast %25 : vector<8x1xf32> to vector<8x32xf32>
    %27 = arith.subf %3, %26 : vector<8x32xf32>
    %28 = math.exp %27 : vector<8x32xf32>
    %cst_8 = arith.constant dense<0.000000e+00> : vector<8xf32>
    %29 = vector.multi_reduction <add>, %28, %cst_8 [1] : vector<8x32xf32> to vector<8xf32>
    %30 = vector.shape_cast %29 : vector<8xf32> to vector<8x1xf32>
    %31 = math.log %30 : vector<8x1xf32>
    %32 = arith.addf %25, %31 : vector<8x1xf32>
    %33 = arith.subf %32, %23 : vector<8x1xf32>
    %cst_9 = arith.constant 0.000000e+00 : f32
    %34 = vector.broadcast %cst_9 : f32 to vector<8x1xf32>
    %35 = arith.select %16, %33, %34 : vector<8x1xi1>, vector<8x1xf32>
    %c0_10 = arith.constant 0 : index
    %c0_11 = arith.constant 0 : index
    %36 = vector.load %arg4[%c0_10, %c0_11] : memref<1x1xf32, #tpu.memory_space<vmem>>, vector<1x1xf32>
    %37 = vector.shape_cast %35 : vector<8x1xf32> to vector<1x8x1xf32>
    %cst_12 = arith.constant dense<0.000000e+00> : vector<1xf32>
    %38 = vector.multi_reduction <add>, %37, %cst_12 [1, 2] : vector<1x8x1xf32> to vector<1xf32>
    %39 = vector.shape_cast %38 : vector<1xf32> to vector<1x1x1xf32>
    %40 = vector.extract %39[0, 0, 0] : f32 from vector<1x1x1xf32>
    %41 = vector.broadcast %40 : f32 to vector<1x1xf32>
    %42 = arith.addf %36, %41 : vector<1x1xf32>
    %c0_13 = arith.constant 0 : index
    %c0_14 = arith.constant 0 : index
    %43 = vector.load %arg4[%c0_13, %c0_14] : memref<1x1xf32, #tpu.memory_space<vmem>>, vector<1x1xf32>
    tpu.vector_store %arg4[%c0_13, %c0_14], %42 {strides = array<i32>} : memref<1x1xf32, #tpu.memory_space<vmem>>, vector<1x1xf32>,
    %c0_15 = arith.constant 0 : index
    %c0_16 = arith.constant 0 : index
    %44 = vector.load %arg5[%c0_15, %c0_16] : memref<1x1xf32, #tpu.memory_space<vmem>>, vector<1x1xf32>
    %45 = arith.extui %16 : vector<8x1xi1> to vector<8x1xi32>
    %46 = arith.sitofp %45 : vector<8x1xi32> to vector<8x1xf32>
    %47 = vector.shape_cast %46 : vector<8x1xf32> to vector<1x8x1xf32>
    %cst_17 = arith.constant dense<0.000000e+00> : vector<1xf32>
    %48 = vector.multi_reduction <add>, %47, %cst_17 [1, 2] : vector<1x8x1xf32> to vector<1xf32>
    %49 = vector.shape_cast %48 : vector<1xf32> to vector<1x1x1xf32>
    %50 = vector.extract %49[0, 0, 0] : f32 from vector<1x1x1xf32>
    %51 = vector.broadcast %50 : f32 to vector<1x1xf32>
    %52 = arith.addf %44, %51 : vector<1x1xf32>
    %c0_18 = arith.constant 0 : index
    %c0_19 = arith.constant 0 : index
    %53 = vector.load %arg5[%c0_18, %c0_19] : memref<1x1xf32, #tpu.memory_space<vmem>>, vector<1x1xf32>
    tpu.vector_store %arg5[%c0_18, %c0_19], %52 {strides = array<i32>} : memref<1x1xf32, #tpu.memory_space<vmem>>, vector<1x1xf32>,
    %c0_i32_20 = arith.constant 0 : i32
    %54 = arith.cmpi eq, %arg0, %c0_i32_20 : i32
    %55 = arith.extui %54 : i1 to i32
    %c0_i32_21 = arith.constant 0 : i32
    %56 = arith.cmpi ne, %55, %c0_i32_21 : i32
    scf.if %56 {
      %c0_22 = arith.constant 0 : index
      %c0_23 = arith.constant 0 : index
      %57 = vector.load %arg5[%c0_22, %c0_23] : memref<1x1xf32, #tpu.memory_space<vmem>>, vector<1x1xf32>
      %cst_24 = arith.constant 1.000000e+00 : f32
      %58 = vector.broadcast %cst_24 : f32 to vector<1x1xf32>
      %59 = arith.maximumf %57, %58 : vector<1x1xf32>
      %c0_25 = arith.constant 0 : index
      %c0_26 = arith.constant 0 : index
      %60 = vector.load %arg4[%c0_25, %c0_26] : memref<1x1xf32, #tpu.memory_space<vmem>>, vector<1x1xf32>
      %61 = arith.divf %60, %59 : vector<1x1xf32>
      %c0_27 = arith.constant 0 : index
      %c0_28 = arith.constant 0 : index
      %62 = vector.load %arg3[%c0_27, %c0_28] : memref<1x1xf32, #tpu.memory_space<vmem>>, vector<1x1xf32>
      tpu.vector_store %arg3[%c0_27, %c0_28], %61 {strides = array<i32>} : memref<1x1xf32, #tpu.memory_space<vmem>>, vector<1x1xf32>,
    } else {
    }
    return
  }
  func.func @transform_0(%arg0: i32) -> (i32, i32) {
    %c0_i32 = arith.constant 0 : i32
    %c0_i32_0 = arith.constant 0 : i32
    return %arg0, %c0_i32 : i32, i32
  }
  func.func @transform_1(%arg0: i32) -> (i32, i32) {
    %c0_i32 = arith.constant 0 : i32
    %c0_i32_0 = arith.constant 0 : i32
    return %arg0, %c0_i32 : i32, i32
  }
  func.func @transform_2(%arg0: i32) -> (i32, i32) {
    %c0_i32 = arith.constant 0 : i32
    %c0_i32_0 = arith.constant 0 : i32
    %c0_i32_1 = arith.constant 0 : i32
    return %c0_i32, %c0_i32_0 : i32, i32
  }
}

</mosaic_0001>

<llo_original>
// kernel: tpu_custom_call.1
$region0: #{tpu_custom_call.1}
  #allocation0 [shape = 'u32[]', space=smem, size = 0x4, offset = 0x4, fixed_abs, tag = 'smem constant byte address 0x4 - core index']
  #allocation1 [shape = 'u32[144,128]{1,0:T(1,128)}', space=vmem, size = 0x12000, scoped, tag = 'internal scratch']
  #allocation2 [shape = 'f32[1,1]{1,0:T(1,128)}', space=vmem, size = 0x200, scoped, tag = 'scratch operand']
  #allocation3 [shape = 'f32[1,1]{1,0:T(1,128)}', space=vmem, size = 0x200, scoped, tag = 'scratch operand']
  %s0 = inlined_call_operand.vmem [shape: f32[8,32], index: 0, kind: input, shape index: {}]
  %s1 = inlined_call_operand.vmem [shape: s32[8,1], index: 1, kind: input, shape index: {}]
  %s2 = inlined_call_operand.hbm [shape: f32[1,1], index: 2, kind: output, shape index: {}]
  %s3 = sld [smem:[#allocation0]]
  $region26: #{tpu_custom_call.1} parent=0
    _
  %s5 = ssub.s32 1, %s3
  %s6 = scalar_select 0, %s5, %s3
  $region1: #{tpu_custom_call.1} parent=0
    #allocation4 [shape = 'u8[512]{0}', space=vmem, size = 0x400, scoped, tag = 'output window, operand 0, single buffered']
    #allocation5 [shape = 's32[1]{0}', space=sflag, size = 0x4, scoped, tag = 'scoped memory for tpu_custom_call.1']
    %7 = vsyncpa [#allocation5], 0
    // Predicated region
    $region2: #{tpu_custom_call.1} parent=1 // pred_check
      _
    $region3: #{tpu_custom_call.1} parent=1 // pred_check_branch
      %9 = sbr.rel (0) target = $region5
    $region4: #{tpu_custom_call.1} parent=1 // pred_region
      _
    $region5: #{tpu_custom_call.1} parent=1 // pred_fallthru
      _
    // Predicated region
    $region6: #{tpu_custom_call.1} parent=1 // pred_check
      _
    $region7: #{tpu_custom_call.1} parent=1 // pred_check_branch
      %11 = sbr.rel (0) target = $region9
    $region8: #{tpu_custom_call.1} parent=1 // pred_region
      _
    $region9: #{tpu_custom_call.1} parent=1 // pred_fallthru
      _
    %p12 = scmp.eq.s32.totalorder 0, 0
    // Predicated region
    $region10: #{tpu_custom_call.1} parent=1 // pred_check
      %p13 = pneg %p12
    $region11: #{tpu_custom_call.1} parent=1 // pred_check_branch
      %15 = sbr.rel (%p13) target = $region13
    $region12: #{tpu_custom_call.1} parent=1 // pred_region
      %vm16 = vcmask 0
      %17 = vst.msk [vmem:[#allocation2] sm:$0x1] %vm16, 0.0
      %18 = vst.msk [vmem:[#allocation3] sm:$0x1] %vm16, 0.0
    $region13: #{tpu_custom_call.1} parent=1 // pred_fallthru
      _
    %v19 = vld [vmem:[%s0] sm:$0xff]
    %v20 = vld [vmem:[%s1] sm:$0xff]
    %v21 = vlaneseq
    %v22 = vshrl.u32 %v21, 7
    %s23 = smul.u32 0, 8
    %v24 = vstv %s23
    %v25 = vadd.s32 %v22, %v24
    %vm26 = vcmp.lt.s32.totalorder %v25, 8
    %vm27 = vcmp.ge.s32.totalorder %v20, 0
    %vm28 = vcmp.lt.s32.totalorder %v20, 32
    %vm29 = vmand %vm27, %vm28
    %vm30 = vmand %vm26, %vm29
    %v31 = vlaneseq
    %v32 = vand.u32 %v31, 127
    %33 = vset.pattern.permute.xlu0 0
    %34 = vperm.xlu0 %33, %v20
    %v35 = vpop.permute.xlu0 %34
    %vm36 = vcmp.eq.s32.totalorder %v32, %v35
    %v37 = vsel %vm36, %v19, 0.0
    %vm38 = vcmask 261120
    %v39 = vsel %vm38, %v37, 0.0
    %40 = vadd.xlane.f32.xlu0 %v39
    %v41 = vpop.xlane.xlu0 %40
    %v42 = vsel %vm38, %v19, -inf
    %43 = vmax.xlane.f32.xlu0 %v42
    %v44 = vpop.xlane.xlu0 %43
    %v45 = vsub.f32 %v19, %v44
    %v46 = vmul.f32 %v45, 1.442695
    %v47 = vpow.pop %v46
    %v48 = vsel %vm38, %v47, 0.0
    %49 = vadd.xlane.f32.xlu0 %v48
    %v50 = vpop.xlane.xlu0 %49
    %v51 = vlog2.pop %v50
    %v52 = vmul.f32 %v51, 0.6931472
    %v53 = vadd.f32 %v44, %v52
    %v54 = vsub.f32 %v53, %v41
    %v55 = vsel %vm30, %v54, 0.0
    %v56 = vld [vmem:[#allocation2] sm:$0x1]
    %vm57 = vcmask 7168
    %v58 = vsel %vm57, %v55, 0.0
    %59 = vadd.xlane.f32.xlu0 %v58
    %v60 = vpop.xlane.xlu0 %59
    %v61 = vrot.slane %v60, 4
    %v62 = vadd.f32 %v60, %v61
    %v63 = vrot.slane %v62, 2
    %v64 = vadd.f32 %v62, %v63
    %v65 = vrot.slane %v64, 1
    %v66 = vadd.f32 %v64, %v65
    %s67 = vtos %v66
    %v68 = vstv %s67
    %v69 = vadd.f32 %v56, %v68
    %vm70 = vcmask 0
    %71 = vst.msk [vmem:[#allocation2] sm:$0x1] %vm70, %v69
    %v72 = vld [vmem:[#allocation3] sm:$0x1]
    %v73 = vsel %vm30, 1, 0
    %v74 = vcvt.s32.f32 %v73
    %v75 = vsel %vm57, %v74, 0.0
    %76 = vadd.xlane.f32.xlu0 %v75
    %v77 = vpop.xlane.xlu0 %76
    %v78 = vrot.slane %v77, 4
    %v79 = vadd.f32 %v77, %v78
    %v80 = vrot.slane %v79, 2
    %v81 = vadd.f32 %v79, %v80
    %v82 = vrot.slane %v81, 1
    %v83 = vadd.f32 %v81, %v82
    %s84 = vtos %v83
    %v85 = vstv %s84
    %v86 = vadd.f32 %v72, %v85
    %87 = vst.msk [vmem:[#allocation3] sm:$0x1] %vm70, %v86
    // Predicated region
    $region14: #{tpu_custom_call.1} parent=1 // pred_check
      %p88 = pneg %p12
    $region15: #{tpu_custom_call.1} parent=1 // pred_check_branch
      %90 = sbr.rel (%p88) target = $region17
    $region16: #{tpu_custom_call.1} parent=1 // pred_region
      %v91 = vld [vmem:[#allocation3] sm:$0x1]
      %v92 = vmax.f32 %v91, 1.0
      %v93 = vld [vmem:[#allocation2] sm:$0x1]
      %v94 = vrcp.pop %v92
      %v95 = vmul.f32 %v93, %v94
      %96 = vst.msk [vmem:[#allocation4] sm:$0x1] %vm70, %v95
    $region17: #{tpu_custom_call.1} parent=1 // pred_fallthru
      _
    // Predicated region
    $region18: #{tpu_custom_call.1} parent=1 // pred_check
      _
    $region19: #{tpu_custom_call.1} parent=1 // pred_check_branch
      %98 = sbr.rel (0) target = $region21
    $region20: #{tpu_custom_call.1} parent=1 // pred_region
      %s100 = ssub.s32 16, 16
      %101 = vsyncadd [#allocation5], %s100
      %s103 = sshll.u32 [#allocation4], 4
      %s104 = int_to_ptr.vmem [resolvable:$true] %s103
      %106 = dma.vmem_to_hbm [thread:$0]  %s104, 16, %s2, [#allocation5]
    $region21: #{tpu_custom_call.1} parent=1 // pred_fallthru
      _
    // Predicated region
    $region22: #{tpu_custom_call.1} parent=1 // pred_check
      _
    $region23: #{tpu_custom_call.1} parent=1 // pred_check_branch
      %108 = sbr.rel (0) target = $region25
    $region24: #{tpu_custom_call.1} parent=1 // pred_region
      %109 = dma.done [#allocation5], 16
    $region25: #{tpu_custom_call.1} parent=1 // pred_fallthru
      _
    %110 = vsyncpa [#allocation5], 1

</llo_original>
